<compile_context>
chip_gen: v6e
topology: v6e:2x2x1
jax: 0.10.0
libtpu: 0.0.40
codegen_flags: <defaults>
</compile_context>

<pallas_src>
import functools

import jax
import jax.numpy as jnp
from jax import lax
from jax.experimental import pallas as pl
from jax.experimental.pallas import tpu as pltpu

D = 264  # feature dimension fixed by the module (nn.Linear(264, 264))


def linear_odef_kernel(x_ref, w_ref, o_ref):
    # x_ref: (TB, D) tile of states in VMEM.
    # w_ref: (D, D) weight in PyTorch (out, in) layout; VMEM-resident across
    #        all grid steps (constant index_map).
    # o_ref: (TB, D) output tile.
    # Contract x dim 1 with W dim 1  ==  x @ W.T  (no wrapper transpose).
    o_ref[...] = lax.dot_general(
        x_ref[...],
        w_ref[...],
        dimension_numbers=(((1,), (1,)), ((), ())),
        preferred_element_type=jnp.float32,
    ).astype(o_ref.dtype)


@functools.partial(jax.jit, static_argnames=("block_b", "compute_dtype"))
def linear_odef_forward(x, W, t=None, *, block_b=512, compute_dtype=None):
    """Equivalent of LinearODEF.forward(x, t) == x @ W.T  (t is unused).

    block_b:       batch tile size (rows per grid step).
    compute_dtype: e.g. jnp.bfloat16 to halve W DMA; accumulation stays f32
                   and the output keeps x's original dtype.
    """
    del t  # t is ignored by the reference module's forward
    B, Din = x.shape
    assert Din == D and W.shape == (D, D)
    out_dtype = x.dtype

    if compute_dtype is not None:
        x_c = x.astype(compute_dtype)
        w_c = W.astype(compute_dtype)
    else:
        x_c, w_c = x, W

    # Pad the batch so it is an exact multiple of the tile (16 covers both the
    # f32 8-sublane and bf16 16-sublane packing). Zero rows are sliced off.
    pack = 16
    tb = min(block_b, pl.cdiv(B, pack) * pack)
    padded_b = pl.cdiv(B, tb) * tb
    if padded_b != B:
        x_c = jnp.pad(x_c, ((0, padded_b - B), (0, 0)))

    elem = jnp.dtype(x_c.dtype).itemsize
    cost = pl.CostEstimate(
        flops=2 * padded_b * D * D,
        transcendentals=0,
        bytes_accessed=(padded_b * D * elem          # x
                        + D * D * elem               # W (loaded once)
                        + padded_b * D * jnp.dtype(out_dtype).itemsize),  # out
    )

    out = pl.pallas_call(
        linear_odef_kernel,
        out_shape=jax.ShapeDtypeStruct((padded_b, D), out_dtype),
        grid=(padded_b // tb,),
        in_specs=[
            pl.BlockSpec((tb, D), lambda i: (i, 0)),   # stream x tiles
            pl.BlockSpec((D, D), lambda i: (0, 0)),    # W resident across grid
        ],
        out_specs=pl.BlockSpec((tb, D), lambda i: (i, 0)),
        compiler_params=pltpu.CompilerParams(
            dimension_semantics=("parallel",),          # shard batch on v7x TCs
            vmem_limit_bytes=32 * 1024 * 1024,
        ),
        cost_estimate=cost,
    )(x_c, w_c)

    return out[:B]


if __name__ == "__main__":
    key = jax.random.PRNGKey(0)
    kx, kw, kt = jax.random.split(key, 3)

    B = 8  # small batch
    x = jax.random.normal(kx, (B, D), dtype=jnp.float32)
    # Deterministic synthetic weight, same shape as the module's W: (264, 264)
    W = jax.random.normal(kw, (D, D), dtype=jnp.float32) / jnp.sqrt(jnp.float32(D))
    t = jax.random.normal(kt, (B, 1), dtype=jnp.float32)  # unused, as in the module

    ref = x @ W.T

    # f32 path
    out_f32 = linear_odef_forward(x, W, t)
    jax.block_until_ready(out_f32)
    assert out_f32.shape == (B, D)
    assert jnp.allclose(out_f32, ref, atol=1e-4, rtol=1e-4)

    # bf16-weight path (halves W DMA; f32 accumulation, f32 output)
    out_bf16 = linear_odef_forward(x, W, t, compute_dtype=jnp.bfloat16)
    jax.block_until_ready(out_bf16)
    assert out_bf16.shape == (B, D)
    assert out_bf16.dtype == jnp.float32
    assert jnp.allclose(out_bf16, ref, atol=5e-2, rtol=5e-2)

    print("KERNEL_OK")
</pallas_src>

<mosaic_0001>
module attributes {stable_mosaic.version = 11 : i64} {
  func.func @linear_odef_kernel(%arg0: i32, %arg1: memref<16x264xf32, #tpu.memory_space<vmem>>, %arg2: memref<264x264xf32, #tpu.memory_space<vmem>>, %arg3: memref<16x264xf32, #tpu.memory_space<vmem>>) attributes {dimension_semantics = [#tpu.dimension_semantics<parallel>], iteration_bounds = array<i64: 1>, scalar_prefetch = 0 : i64, scratch_operands = 0 : i64, tpu.core_type = #tpu.core_type<tc>, window_params = [{transform_indices = @transform_0, window_bounds = array<i64: 16, 264>}, {pipeline_mode = #tpu.pipeline_mode<synchronous>, transform_indices = @transform_1, window_bounds = array<i64: 264, 264>}, {transform_indices = @transform_2, window_bounds = array<i64: 16, 264>}]} {
    %c0 = arith.constant 0 : index
    %c0_0 = arith.constant 0 : index
    %0 = vector.load %arg1[%c0, %c0_0] : memref<16x264xf32, #tpu.memory_space<vmem>>, vector<16x264xf32>
    %c0_1 = arith.constant 0 : index
    %c0_2 = arith.constant 0 : index
    %1 = vector.load %arg2[%c0_1, %c0_2] : memref<264x264xf32, #tpu.memory_space<vmem>>, vector<264x264xf32>
    %cst = arith.constant dense<0.000000e+00> : vector<16x264xf32>
    %2 = tpu.matmul %0, %1, %cst {dimension_numbers = #tpu.dot_dimension_numbers<[1], [1], [0], [0], [0, 0, 1, 0], [], []>} : vector<16x264xf32>, vector<264x264xf32>, vector<16x264xf32> -> vector<16x264xf32>
    %c0_3 = arith.constant 0 : index
    %c0_4 = arith.constant 0 : index
    %3 = vector.load %arg3[%c0_3, %c0_4] : memref<16x264xf32, #tpu.memory_space<vmem>>, vector<16x264xf32>
    tpu.vector_store %arg3[%c0_3, %c0_4], %2 {strides = array<i32>} : memref<16x264xf32, #tpu.memory_space<vmem>>, vector<16x264xf32>,
    return
  }
  func.func @transform_0(%arg0: i32) -> (i32, i32) {
    %c0_i32 = arith.constant 0 : i32
    %c0_i32_0 = arith.constant 0 : i32
    return %arg0, %c0_i32 : i32, i32
  }
  func.func @transform_1(%arg0: i32) -> (i32, i32) {
    %c0_i32 = arith.constant 0 : i32
    %c0_i32_0 = arith.constant 0 : i32
    %c0_i32_1 = arith.constant 0 : i32
    return %c0_i32, %c0_i32_0 : i32, i32
  }
  func.func @transform_2(%arg0: i32) -> (i32, i32) {
    %c0_i32 = arith.constant 0 : i32
    %c0_i32_0 = arith.constant 0 : i32
    return %arg0, %c0_i32 : i32, i32
  }
}

</mosaic_0001>

<llo_original>
// kernel: linear_odef_forward.1
$region0: #{linear_odef_forward.1}
  #allocation0 [shape = 'u32[]', space=smem, size = 0x4, offset = 0x4, fixed_abs, tag = 'smem constant byte address 0x4 - core index']
  #allocation1 [shape = 'u32[144,128]{1,0:T(1,128)}', space=vmem, size = 0x12000, scoped, tag = 'internal scratch']
  %s0 = inlined_call_operand.vmem [shape: f32[16,264], index: 0, kind: input, shape index: {}]
  %s1 = inlined_call_operand.hbm [shape: f32[264,264], index: 1, kind: input, shape index: {}]
  %s2 = inlined_call_operand.vmem [shape: f32[16,264], index: 2, kind: output, shape index: {}]
  %s3 = sld [smem:[#allocation0]]
  $region22: #{linear_odef_forward.1} parent=0
    _
  %s5 = ssub.s32 1, %s3
  %s6 = scalar_select 0, %s5, %s3
  $region1: #{linear_odef_forward.1} parent=0
    #allocation2 [shape = 'u8[405504]{0}', space=vmem, size = 0x63000, scoped, tag = 'input window, operand 1, single buffered']
    #allocation3 [shape = 's32[1]{0}', space=sflag, size = 0x4, scoped, tag = 'scoped memory for linear_odef_forward.1']
    %7 = vsyncpa [#allocation3], 0
    // Predicated region
    $region2: #{linear_odef_forward.1} parent=1 // pred_check
      _
    $region3: #{linear_odef_forward.1} parent=1 // pred_check_branch
      %9 = sbr.rel (0) target = $region5
    $region4: #{linear_odef_forward.1} parent=1 // pred_region
      _
    $region5: #{linear_odef_forward.1} parent=1 // pred_fallthru
      _
    // Predicated region
    $region6: #{linear_odef_forward.1} parent=1 // pred_check
      _
    $region7: #{linear_odef_forward.1} parent=1 // pred_check_branch
      %11 = sbr.rel (0) target = $region9
    $region8: #{linear_odef_forward.1} parent=1 // pred_region
      %s13 = ssub.s32 12672, 12672
      %14 = vsyncadd [#allocation3], %s13
      %s15 = sshll.u32 [#allocation2], 4
      %s16 = int_to_ptr.vmem [resolvable:$true] %s15
      %21 = dma.hbm_to_vmem [thread:$0]  %s1, 12672, %s16, [#allocation3], 384, 384, 24
    $region9: #{linear_odef_forward.1} parent=1 // pred_fallthru
      _
    // Predicated region
    $region10: #{linear_odef_forward.1} parent=1 // pred_check
      _
    $region11: #{linear_odef_forward.1} parent=1 // pred_check_branch
      %23 = sbr.rel (0) target = $region13
    $region12: #{linear_odef_forward.1} parent=1 // pred_region
      %24 = dma.done [#allocation3], 12672
    $region13: #{linear_odef_forward.1} parent=1 // pred_fallthru
      _
    %v25 = vld [vmem:[%s0] sm:$0xff]
    %v26 = vld [vmem:[%s0 + $0x8] sm:$0xff]
    %v27 = vld [vmem:[%s0 + $0x10] sm:$0xff]
    %v28 = vld [vmem:[%s0 + $0x18] sm:$0xff]
    %v29 = vld [vmem:[%s0 + $0x20] sm:$0xff]
    %v30 = vld [vmem:[%s0 + $0x28] sm:$0xff]
    %v31 = vld [vmem:[#allocation2] sm:$0xff]
    %v32 = vld [vmem:[#allocation2 + $0x8] sm:$0xff]
    %v33 = vld [vmem:[#allocation2 + $0x10] sm:$0xff]
    %v34 = vld [vmem:[#allocation2 + $0x18] sm:$0xff]
    %v35 = vld [vmem:[#allocation2 + $0x20] sm:$0xff]
    %v36 = vld [vmem:[#allocation2 + $0x28] sm:$0xff]
    %v37 = vld [vmem:[#allocation2 + $0x30] sm:$0xff]
    %v38 = vld [vmem:[#allocation2 + $0x38] sm:$0xff]
    %v39 = vld [vmem:[#allocation2 + $0x40] sm:$0xff]
    %v40 = vld [vmem:[#allocation2 + $0x48] sm:$0xff]
    %v41 = vld [vmem:[#allocation2 + $0x50] sm:$0xff]
    %v42 = vld [vmem:[#allocation2 + $0x58] sm:$0xff]
    %v43 = vld [vmem:[#allocation2 + $0x60] sm:$0xff]
    %v44 = vld [vmem:[#allocation2 + $0x68] sm:$0xff]
    %v45 = vld [vmem:[#allocation2 + $0x70] sm:$0xff]
    %v46 = vld [vmem:[#allocation2 + $0x78] sm:$0xff]
    %v47 = vld [vmem:[#allocation2 + $0x80] sm:$0xff]
    %v48 = vld [vmem:[#allocation2 + $0x88] sm:$0xff]
    %v49 = vld [vmem:[#allocation2 + $0x90] sm:$0xff]
    %v50 = vld [vmem:[#allocation2 + $0x98] sm:$0xff]
    %v51 = vld [vmem:[#allocation2 + $0xa0] sm:$0xff]
    %v52 = vld [vmem:[#allocation2 + $0xa8] sm:$0xff]
    %v53 = vld [vmem:[#allocation2 + $0xb0] sm:$0xff]
    %v54 = vld [vmem:[#allocation2 + $0xb8] sm:$0xff]
    %v55 = vld [vmem:[#allocation2 + $0xc0] sm:$0xff]
    %v56 = vld [vmem:[#allocation2 + $0xc8] sm:$0xff]
    %v57 = vld [vmem:[#allocation2 + $0xd0] sm:$0xff]
    %v58 = vld [vmem:[#allocation2 + $0xd8] sm:$0xff]
    %v59 = vld [vmem:[#allocation2 + $0xe0] sm:$0xff]
    %v60 = vld [vmem:[#allocation2 + $0xe8] sm:$0xff]
    %v61 = vld [vmem:[#allocation2 + $0xf0] sm:$0xff]
    %v62 = vld [vmem:[#allocation2 + $0xf8] sm:$0xff]
    %v63 = vld [vmem:[#allocation2 + $0x100] sm:$0xff]
    %v64 = vld [vmem:[#allocation2 + $0x108] sm:$0xff]
    %v65 = vld [vmem:[#allocation2 + $0x110] sm:$0xff]
    %v66 = vld [vmem:[#allocation2 + $0x118] sm:$0xff]
    %v67 = vld [vmem:[#allocation2 + $0x120] sm:$0xff]
    %v68 = vld [vmem:[#allocation2 + $0x128] sm:$0xff]
    %v69 = vld [vmem:[#allocation2 + $0x130] sm:$0xff]
    %v70 = vld [vmem:[#allocation2 + $0x138] sm:$0xff]
    %v71 = vld [vmem:[#allocation2 + $0x140] sm:$0xff]
    %v72 = vld [vmem:[#allocation2 + $0x148] sm:$0xff]
    %v73 = vld [vmem:[#allocation2 + $0x150] sm:$0xff]
    %v74 = vld [vmem:[#allocation2 + $0x158] sm:$0xff]
    %v75 = vld [vmem:[#allocation2 + $0x160] sm:$0xff]
    %v76 = vld [vmem:[#allocation2 + $0x168] sm:$0xff]
    %v77 = vld [vmem:[#allocation2 + $0x170] sm:$0xff]
    %v78 = vld [vmem:[#allocation2 + $0x178] sm:$0xff]
    %v79 = vld [vmem:[#allocation2 + $0x180] sm:$0xff]
    %v80 = vld [vmem:[#allocation2 + $0x188] sm:$0xff]
    %v81 = vld [vmem:[#allocation2 + $0x190] sm:$0xff]
    %v82 = vld [vmem:[#allocation2 + $0x198] sm:$0xff]
    %v83 = vld [vmem:[#allocation2 + $0x1a0] sm:$0xff]
    %v84 = vld [vmem:[#allocation2 + $0x1a8] sm:$0xff]
    %v85 = vld [vmem:[#allocation2 + $0x1b0] sm:$0xff]
    %v86 = vld [vmem:[#allocation2 + $0x1b8] sm:$0xff]
    %v87 = vld [vmem:[#allocation2 + $0x1c0] sm:$0xff]
    %v88 = vld [vmem:[#allocation2 + $0x1c8] sm:$0xff]
    %v89 = vld [vmem:[#allocation2 + $0x1d0] sm:$0xff]
    %v90 = vld [vmem:[#allocation2 + $0x1d8] sm:$0xff]
    %v91 = vld [vmem:[#allocation2 + $0x1e0] sm:$0xff]
    %v92 = vld [vmem:[#allocation2 + $0x1e8] sm:$0xff]
    %v93 = vld [vmem:[#allocation2 + $0x1f0] sm:$0xff]
    %v94 = vld [vmem:[#allocation2 + $0x1f8] sm:$0xff]
    %v95 = vld [vmem:[#allocation2 + $0x200] sm:$0xff]
    %v96 = vld [vmem:[#allocation2 + $0x208] sm:$0xff]
    %v97 = vld [vmem:[#allocation2 + $0x210] sm:$0xff]
    %v98 = vld [vmem:[#allocation2 + $0x218] sm:$0xff]
    %v99 = vld [vmem:[#allocation2 + $0x220] sm:$0xff]
    %v100 = vld [vmem:[#allocation2 + $0x228] sm:$0xff]
    %v101 = vld [vmem:[#allocation2 + $0x230] sm:$0xff]
    %v102 = vld [vmem:[#allocation2 + $0x238] sm:$0xff]
    %v103 = vld [vmem:[#allocation2 + $0x240] sm:$0xff]
    %v104 = vld [vmem:[#allocation2 + $0x248] sm:$0xff]
    %v105 = vld [vmem:[#allocation2 + $0x250] sm:$0xff]
    %v106 = vld [vmem:[#allocation2 + $0x258] sm:$0xff]
    %v107 = vld [vmem:[#allocation2 + $0x260] sm:$0xff]
    %v108 = vld [vmem:[#allocation2 + $0x268] sm:$0xff]
    %v109 = vld [vmem:[#allocation2 + $0x270] sm:$0xff]
    %v110 = vld [vmem:[#allocation2 + $0x278] sm:$0xff]
    %v111 = vld [vmem:[#allocation2 + $0x280] sm:$0xff]
    %v112 = vld [vmem:[#allocation2 + $0x288] sm:$0xff]
    %v113 = vld [vmem:[#allocation2 + $0x290] sm:$0xff]
    %v114 = vld [vmem:[#allocation2 + $0x298] sm:$0xff]
    %v115 = vld [vmem:[#allocation2 + $0x2a0] sm:$0xff]
    %v116 = vld [vmem:[#allocation2 + $0x2a8] sm:$0xff]
    %v117 = vld [vmem:[#allocation2 + $0x2b0] sm:$0xff]
    %v118 = vld [vmem:[#allocation2 + $0x2b8] sm:$0xff]
    %v119 = vld [vmem:[#allocation2 + $0x2c0] sm:$0xff]
    %v120 = vld [vmem:[#allocation2 + $0x2c8] sm:$0xff]
    %v121 = vld [vmem:[#allocation2 + $0x2d0] sm:$0xff]
    %v122 = vld [vmem:[#allocation2 + $0x2d8] sm:$0xff]
    %v123 = vld [vmem:[#allocation2 + $0x2e0] sm:$0xff]
    %v124 = vld [vmem:[#allocation2 + $0x2e8] sm:$0xff]
    %v125 = vld [vmem:[#allocation2 + $0x2f0] sm:$0xff]
    %v126 = vld [vmem:[#allocation2 + $0x2f8] sm:$0xff]
    %v127 = vld [vmem:[#allocation2 + $0x300] sm:$0xff]
    %v128 = vld [vmem:[#allocation2 + $0x308] sm:$0xff]
    %v129 = vld [vmem:[#allocation2 + $0x310] sm:$0xff]
    %vm130 = vcmask 64512
    %v132 = vsel %vm130, %v27, 0
    %v135 = vsel %vm130, %v30, 0
    %v138 = vsel %vm130, %v33, 0
    %v141 = vsel %vm130, %v36, 0
    %v144 = vsel %vm130, %v39, 0
    %v147 = vsel %vm130, %v42, 0
    %v150 = vsel %vm130, %v45, 0
    %v153 = vsel %vm130, %v48, 0
    %v156 = vsel %vm130, %v51, 0
    %v159 = vsel %vm130, %v54, 0
    %v162 = vsel %vm130, %v57, 0
    %v165 = vsel %vm130, %v60, 0
    %v168 = vsel %vm130, %v63, 0
    %v171 = vsel %vm130, %v66, 0
    %v174 = vsel %vm130, %v69, 0
    %v177 = vsel %vm130, %v72, 0
    %v180 = vsel %vm130, %v75, 0
    %v183 = vsel %vm130, %v78, 0
    %v186 = vsel %vm130, %v81, 0
    %v189 = vsel %vm130, %v84, 0
    %v192 = vsel %vm130, %v87, 0
    %v195 = vsel %vm130, %v90, 0
    %v198 = vsel %vm130, %v93, 0
    %v201 = vsel %vm130, %v96, 0
    %v204 = vsel %vm130, %v99, 0
    %v207 = vsel %vm130, %v102, 0
    %v210 = vsel %vm130, %v105, 0
    %v213 = vsel %vm130, %v108, 0
    %v216 = vsel %vm130, %v111, 0
    %v219 = vsel %vm130, %v114, 0
    %v222 = vsel %vm130, %v117, 0
    %v225 = vsel %vm130, %v120, 0
    %v228 = vsel %vm130, %v123, 0
    %v231 = vsel %vm130, %v126, 0
    %v234 = vsel %vm130, %v129, 0
    %236 = vmatprep.subr.mxu0 %v77
    %237 = vmatpush1.xpose.msra.mxu0 %v76
    %238 = vmatprep.subr.mxu0 %v74
    %239 = vmatpush1.xpose.msra.mxu0 %v73
    %240 = vmatprep.subr.mxu0 %v71
    %241 = vmatpush1.xpose.msra.mxu0 %v70
    %242 = vmatprep.subr.mxu0 %v68
    %243 = vmatpush1.xpose.msra.mxu0 %v67
    %244 = vmatprep.subr.mxu0 %v65
    %245 = vmatpush1.xpose.msra.mxu0 %v64
    %246 = vmatprep.subr.mxu0 %v62
    %247 = vmatpush1.xpose.msra.mxu0 %v61
    %248 = vmatprep.subr.mxu0 %v59
    %249 = vmatpush1.xpose.msra.mxu0 %v58
    %250 = vmatprep.subr.mxu0 %v56
    %251 = vmatpush1.xpose.msra.mxu0 %v55
    %252 = vmatprep.subr.mxu0 %v53
    %253 = vmatpush1.xpose.msra.mxu0 %v52
    %254 = vmatprep.subr.mxu0 %v50
    %255 = vmatpush1.xpose.msra.mxu0 %v49
    %256 = vmatprep.subr.mxu0 %v47
    %257 = vmatpush1.xpose.msra.mxu0 %v46
    %258 = vmatprep.subr.mxu0 %v44
    %259 = vmatpush1.xpose.msra.mxu0 %v43
    %260 = vmatprep.subr.mxu0 %v41
    %261 = vmatpush1.xpose.msra.mxu0 %v40
    %262 = vmatprep.subr.mxu0 %v38
    %263 = vmatpush1.xpose.msra.mxu0 %v37
    %264 = vmatprep.subr.mxu0 %v35
    %265 = vmatpush1.xpose.msra.mxu0 %v34
    %266 = vmatprep.subr.mxu0 %v32
    %267 = vmatpush1.xpose.msra.mxu0 %v31
    %268 = vmatprep.subr.mxu0 %v125
    %269 = vmatpush2.xpose.msra.mxu0 %v124
    %270 = vmatprep.subr.mxu0 %v122
    %271 = vmatpush2.xpose.msra.mxu0 %v121
    %272 = vmatprep.subr.mxu0 %v119
    %273 = vmatpush2.xpose.msra.mxu0 %v118
    %274 = vmatprep.subr.mxu0 %v116
    %275 = vmatpush2.xpose.msra.mxu0 %v115
    %276 = vmatprep.subr.mxu0 %v113
    %277 = vmatpush2.xpose.msra.mxu0 %v112
    %278 = vmatprep.subr.mxu0 %v110
    %279 = vmatpush2.xpose.msra.mxu0 %v109
    %280 = vmatprep.subr.mxu0 %v107
    %281 = vmatpush2.xpose.msra.mxu0 %v106
    %282 = vmatprep.subr.mxu0 %v104
    %283 = vmatpush2.xpose.msra.mxu0 %v103
    %284 = vmatprep.subr.mxu0 %v101
    %285 = vmatpush2.xpose.msra.mxu0 %v100
    %286 = vmatprep.subr.mxu0 %v98
    %287 = vmatpush2.xpose.msra.mxu0 %v97
    %288 = vmatprep.subr.mxu0 %v95
    %289 = vmatpush2.xpose.msra.mxu0 %v94
    %290 = vmatprep.subr.mxu0 %v92
    %291 = vmatpush2.xpose.msra.mxu0 %v91
    %292 = vmatprep.subr.mxu0 %v89
    %293 = vmatpush2.xpose.msra.mxu0 %v88
    %294 = vmatprep.subr.mxu0 %v86
    %295 = vmatpush2.xpose.msra.mxu0 %v85
    %296 = vmatprep.subr.mxu0 %v83
    %297 = vmatpush2.xpose.msra.mxu0 %v82
    %298 = vmatprep.subr.mxu0 %v80
    %299 = vmatpush2.xpose.msra.mxu0 %v79
    %300 = vmatprep.mubr.f32.mxu0 %v26
    %301 = vmatmul.mubr.f32.gmra.mxu0 %v25
    %v302 = vpop.f32.mrf.mxu0
    %v303 = vadd.f32 0.0, %v302
    %v304 = vpop.f32.mrf.mxu0
    %v305 = vadd.f32 0.0, %v304
    %306 = vmatprep.mubr.f32.mxu0 %v29
    %307 = vmatmul.mubr.f32.gmra.mxu0 %v28
    %v308 = vpop.f32.mrf.mxu0
    %v309 = vadd.f32 0.0, %v308
    %v310 = vpop.f32.mrf.mxu0
    %v311 = vadd.f32 0.0, %v310
    %312 = vdwg.mxu0
    %313 = vmatprep.subr.mxu0 0.0
    %314 = vmatpush1.xpose.msra.mxu0 %v183
    %315 = vmatprep.subr.mxu0 0.0
    %316 = vmatpush1.xpose.msra.mxu0 %v180
    %317 = vmatprep.subr.mxu0 0.0
    %318 = vmatpush1.xpose.msra.mxu0 %v177
    %319 = vmatprep.subr.mxu0 0.0
    %320 = vmatpush1.xpose.msra.mxu0 %v174
    %321 = vmatprep.subr.mxu0 0.0
    %322 = vmatpush1.xpose.msra.mxu0 %v171
    %323 = vmatprep.subr.mxu0 0.0
    %324 = vmatpush1.xpose.msra.mxu0 %v168
    %325 = vmatprep.subr.mxu0 0.0
    %326 = vmatpush1.xpose.msra.mxu0 %v165
    %327 = vmatprep.subr.mxu0 0.0
    %328 = vmatpush1.xpose.msra.mxu0 %v162
    %329 = vmatprep.subr.mxu0 0.0
    %330 = vmatpush1.xpose.msra.mxu0 %v159
    %331 = vmatprep.subr.mxu0 0.0
    %332 = vmatpush1.xpose.msra.mxu0 %v156
    %333 = vmatprep.subr.mxu0 0.0
    %334 = vmatpush1.xpose.msra.mxu0 %v153
    %335 = vmatprep.subr.mxu0 0.0
    %336 = vmatpush1.xpose.msra.mxu0 %v150
    %337 = vmatprep.subr.mxu0 0.0
    %338 = vmatpush1.xpose.msra.mxu0 %v147
    %339 = vmatprep.subr.mxu0 0.0
    %340 = vmatpush1.xpose.msra.mxu0 %v144
    %341 = vmatprep.subr.mxu0 0.0
    %342 = vmatpush1.xpose.msra.mxu0 %v141
    %343 = vmatprep.subr.mxu0 0.0
    %344 = vmatpush1.xpose.msra.mxu0 %v138
    %345 = vmatprep.subr.mxu0 0.0
    %346 = vmatpush2.xpose.msra.mxu0 %v231
    %347 = vmatprep.subr.mxu0 0.0
    %348 = vmatpush2.xpose.msra.mxu0 %v228
    %349 = vmatprep.subr.mxu0 0.0
    %350 = vmatpush2.xpose.msra.mxu0 %v225
    %351 = vmatprep.subr.mxu0 0.0
    %352 = vmatpush2.xpose.msra.mxu0 %v222
    %353 = vmatprep.subr.mxu0 0.0
    %354 = vmatpush2.xpose.msra.mxu0 %v219
    %355 = vmatprep.subr.mxu0 0.0
    %356 = vmatpush2.xpose.msra.mxu0 %v216
    %357 = vmatprep.subr.mxu0 0.0
    %358 = vmatpush2.xpose.msra.mxu0 %v213
    %359 = vmatprep.subr.mxu0 0.0
    %360 = vmatpush2.xpose.msra.mxu0 %v210
    %361 = vmatprep.subr.mxu0 0.0
    %362 = vmatpush2.xpose.msra.mxu0 %v207
    %363 = vmatprep.subr.mxu0 0.0
    %364 = vmatpush2.xpose.msra.mxu0 %v204
    %365 = vmatprep.subr.mxu0 0.0
    %366 = vmatpush2.xpose.msra.mxu0 %v201
    %367 = vmatprep.subr.mxu0 0.0
    %368 = vmatpush2.xpose.msra.mxu0 %v198
    %369 = vmatprep.subr.mxu0 0.0
    %370 = vmatpush2.xpose.msra.mxu0 %v195
    %371 = vmatprep.subr.mxu0 0.0
    %372 = vmatpush2.xpose.msra.mxu0 %v192
    %373 = vmatprep.subr.mxu0 0.0
    %374 = vmatpush2.xpose.msra.mxu0 %v189
    %375 = vmatprep.subr.mxu0 0.0
    %376 = vmatpush2.xpose.msra.mxu0 %v186
    %377 = vmatprep.mubr.f32.mxu0 0.0
    %378 = vmatmul.mubr.f32.gmra.mxu0 %v132
    %v379 = vpop.f32.mrf.mxu0
    %v380 = vadd.f32 %v303, %v379
    %v381 = vpop.f32.mrf.mxu0
    %v382 = vadd.f32 %v305, %v381
    %383 = vmatprep.mubr.f32.mxu0 0.0
    %384 = vmatmul.mubr.f32.gmra.mxu0 %v135
    %v385 = vpop.f32.mrf.mxu0
    %v386 = vadd.f32 %v309, %v385
    %v387 = vpop.f32.mrf.mxu0
    %v388 = vadd.f32 %v311, %v387
    %389 = vdwg.mxu0
    %390 = vmatprep.subr.mxu0 0.0
    %391 = vmatpush1.xpose.msra.mxu0 0.0
    %392 = vmatprep.subr.mxu0 0.0
    %393 = vmatpush1.xpose.msra.mxu0 0.0
    %394 = vmatprep.subr.mxu0 0.0
    %395 = vmatpush1.xpose.msra.mxu0 0.0
    %396 = vmatprep.subr.mxu0 0.0
    %397 = vmatpush1.xpose.msra.mxu0 0.0
    %398 = vmatprep.subr.mxu0 0.0
    %399 = vmatpush1.xpose.msra.mxu0 0.0
    %400 = vmatprep.subr.mxu0 0.0
    %401 = vmatpush1.xpose.msra.mxu0 0.0
    %402 = vmatprep.subr.mxu0 0.0
    %403 = vmatpush1.xpose.msra.mxu0 0.0
    %404 = vmatprep.subr.mxu0 0.0
    %405 = vmatpush1.xpose.msra.mxu0 0.0
    %406 = vmatprep.subr.mxu0 0.0
    %407 = vmatpush1.xpose.msra.mxu0 0.0
    %408 = vmatprep.subr.mxu0 0.0
    %409 = vmatpush1.xpose.msra.mxu0 0.0
    %410 = vmatprep.subr.mxu0 0.0
    %411 = vmatpush1.xpose.msra.mxu0 0.0
    %412 = vmatprep.subr.mxu0 0.0
    %413 = vmatpush1.xpose.msra.mxu0 0.0
    %414 = vmatprep.subr.mxu0 0.0
    %415 = vmatpush1.xpose.msra.mxu0 0.0
    %416 = vmatprep.subr.mxu0 0.0
    %417 = vmatpush1.xpose.msra.mxu0 0.0
    %418 = vmatprep.subr.mxu0 0.0
    %419 = vmatpush1.xpose.msra.mxu0 0.0
    %420 = vmatprep.subr.mxu0 %v128
    %421 = vmatpush1.xpose.msra.mxu0 %v127
    %422 = vmatprep.subr.mxu0 0.0
    %423 = vmatpush2.xpose.msra.mxu0 0.0
    %424 = vmatprep.subr.mxu0 0.0
    %425 = vmatpush2.xpose.msra.mxu0 0.0
    %426 = vmatprep.subr.mxu0 0.0
    %427 = vmatpush2.xpose.msra.mxu0 0.0
    %428 = vmatprep.subr.mxu0 0.0
    %429 = vmatpush2.xpose.msra.mxu0 0.0
    %430 = vmatprep.subr.mxu0 0.0
    %431 = vmatpush2.xpose.msra.mxu0 0.0
    %432 = vmatprep.subr.mxu0 0.0
    %433 = vmatpush2.xpose.msra.mxu0 0.0
    %434 = vmatprep.subr.mxu0 0.0
    %435 = vmatpush2.xpose.msra.mxu0 0.0
    %436 = vmatprep.subr.mxu0 0.0
    %437 = vmatpush2.xpose.msra.mxu0 0.0
    %438 = vmatprep.subr.mxu0 0.0
    %439 = vmatpush2.xpose.msra.mxu0 0.0
    %440 = vmatprep.subr.mxu0 0.0
    %441 = vmatpush2.xpose.msra.mxu0 0.0
    %442 = vmatprep.subr.mxu0 0.0
    %443 = vmatpush2.xpose.msra.mxu0 0.0
    %444 = vmatprep.subr.mxu0 0.0
    %445 = vmatpush2.xpose.msra.mxu0 0.0
    %446 = vmatprep.subr.mxu0 0.0
    %447 = vmatpush2.xpose.msra.mxu0 0.0
    %448 = vmatprep.subr.mxu0 0.0
    %449 = vmatpush2.xpose.msra.mxu0 0.0
    %450 = vmatprep.subr.mxu0 0.0
    %451 = vmatpush2.xpose.msra.mxu0 0.0
    %452 = vmatprep.subr.mxu0 0.0
    %453 = vmatpush2.xpose.msra.mxu0 0.0
    %454 = vmatprep.mubr.f32.mxu0 %v26
    %455 = vmatmul.mubr.f32.gmra.mxu0 %v25
    %v456 = vpop.f32.mrf.mxu0
    %v457 = vadd.f32 0.0, %v456
    %v458 = vpop.f32.mrf.mxu0
    %459 = vmatprep.mubr.f32.mxu0 %v29
    %460 = vmatmul.mubr.f32.gmra.mxu0 %v28
    %v461 = vpop.f32.mrf.mxu0
    %v462 = vadd.f32 0.0, %v461
    %v463 = vpop.f32.mrf.mxu0
    %464 = vdwg.mxu0
    %465 = vmatprep.subr.mxu0 0.0
    %466 = vmatpush1.xpose.msra.mxu0 0.0
    %467 = vmatprep.subr.mxu0 0.0
    %468 = vmatpush1.xpose.msra.mxu0 0.0
    %469 = vmatprep.subr.mxu0 0.0
    %470 = vmatpush1.xpose.msra.mxu0 0.0
    %471 = vmatprep.subr.mxu0 0.0
    %472 = vmatpush1.xpose.msra.mxu0 0.0
    %473 = vmatprep.subr.mxu0 0.0
    %474 = vmatpush1.xpose.msra.mxu0 0.0
    %475 = vmatprep.subr.mxu0 0.0
    %476 = vmatpush1.xpose.msra.mxu0 0.0
    %477 = vmatprep.subr.mxu0 0.0
    %478 = vmatpush1.xpose.msra.mxu0 0.0
    %479 = vmatprep.subr.mxu0 0.0
    %480 = vmatpush1.xpose.msra.mxu0 0.0
    %481 = vmatprep.subr.mxu0 0.0
    %482 = vmatpush1.xpose.msra.mxu0 0.0
    %483 = vmatprep.subr.mxu0 0.0
    %484 = vmatpush1.xpose.msra.mxu0 0.0
    %485 = vmatprep.subr.mxu0 0.0
    %486 = vmatpush1.xpose.msra.mxu0 0.0
    %487 = vmatprep.subr.mxu0 0.0
    %488 = vmatpush1.xpose.msra.mxu0 0.0
    %489 = vmatprep.subr.mxu0 0.0
    %490 = vmatpush1.xpose.msra.mxu0 0.0
    %491 = vmatprep.subr.mxu0 0.0
    %492 = vmatpush1.xpose.msra.mxu0 0.0
    %493 = vmatprep.subr.mxu0 0.0
    %494 = vmatpush1.xpose.msra.mxu0 0.0
    %495 = vmatprep.subr.mxu0 0.0
    %496 = vmatpush1.xpose.msra.mxu0 %v234
    %497 = vmatprep.subr.mxu0 0.0
    %498 = vmatpush2.xpose.msra.mxu0 0.0
    %499 = vmatprep.subr.mxu0 0.0
    %500 = vmatpush2.xpose.msra.mxu0 0.0
    %501 = vmatprep.subr.mxu0 0.0
    %502 = vmatpush2.xpose.msra.mxu0 0.0
    %503 = vmatprep.subr.mxu0 0.0
    %504 = vmatpush2.xpose.msra.mxu0 0.0
    %505 = vmatprep.subr.mxu0 0.0
    %506 = vmatpush2.xpose.msra.mxu0 0.0
    %507 = vmatprep.subr.mxu0 0.0
    %508 = vmatpush2.xpose.msra.mxu0 0.0
    %509 = vmatprep.subr.mxu0 0.0
    %510 = vmatpush2.xpose.msra.mxu0 0.0
    %511 = vmatprep.subr.mxu0 0.0
    %512 = vmatpush2.xpose.msra.mxu0 0.0
    %513 = vmatprep.subr.mxu0 0.0
    %514 = vmatpush2.xpose.msra.mxu0 0.0
    %515 = vmatprep.subr.mxu0 0.0
    %516 = vmatpush2.xpose.msra.mxu0 0.0
    %517 = vmatprep.subr.mxu0 0.0
    %518 = vmatpush2.xpose.msra.mxu0 0.0
    %519 = vmatprep.subr.mxu0 0.0
    %520 = vmatpush2.xpose.msra.mxu0 0.0
    %521 = vmatprep.subr.mxu0 0.0
    %522 = vmatpush2.xpose.msra.mxu0 0.0
    %523 = vmatprep.subr.mxu0 0.0
    %524 = vmatpush2.xpose.msra.mxu0 0.0
    %525 = vmatprep.subr.mxu0 0.0
    %526 = vmatpush2.xpose.msra.mxu0 0.0
    %527 = vmatprep.subr.mxu0 0.0
    %528 = vmatpush2.xpose.msra.mxu0 0.0
    %529 = vmatprep.mubr.f32.mxu0 0.0
    %530 = vmatmul.mubr.f32.gmra.mxu0 %v132
    %v531 = vpop.f32.mrf.mxu0
    %v532 = vadd.f32 %v457, %v531
    %v533 = vpop.f32.mrf.mxu0
    %534 = vmatprep.mubr.f32.mxu0 0.0
    %535 = vmatmul.mubr.f32.gmra.mxu0 %v135
    %v536 = vpop.f32.mrf.mxu0
    %v537 = vadd.f32 %v462, %v536
    %v538 = vpop.f32.mrf.mxu0
    %539 = vdwg.mxu0
    %540 = vst [vmem:[%s2] sm:$0xff] %v380
    %541 = vst [vmem:[%s2 + $0x8] sm:$0xff] %v382
    %542 = vst.msk [vmem:[%s2 + $0x10] sm:$0xff] %vm130, %v532
    %543 = vst [vmem:[%s2 + $0x18] sm:$0xff] %v386
    %544 = vst [vmem:[%s2 + $0x20] sm:$0xff] %v388
    %545 = vst.msk [vmem:[%s2 + $0x28] sm:$0xff] %vm130, %v537
    // Predicated region
    $region14: #{linear_odef_forward.1} parent=1 // pred_check
      _
    $region15: #{linear_odef_forward.1} parent=1 // pred_check_branch
      %547 = sbr.rel (0) target = $region17
    $region16: #{linear_odef_forward.1} parent=1 // pred_region
      _
    $region17: #{linear_odef_forward.1} parent=1 // pred_fallthru
      _
    // Predicated region
    $region18: #{linear_odef_forward.1} parent=1 // pred_check
      _
    $region19: #{linear_odef_forward.1} parent=1 // pred_check_branch
      %549 = sbr.rel (0) target = $region21
    $region20: #{linear_odef_forward.1} parent=1 // pred_region
      _
    $region21: #{linear_odef_forward.1} parent=1 // pred_fallthru
      _
    %550 = vsyncpa [#allocation3], 1

</llo_original>
